<compile_context>
chip_gen: v5e
topology: v5e:2x2
jax: 0.10.0
libtpu: 0.0.40
codegen_flags: <defaults>
</compile_context>

<pallas_src>
import functools

import jax
import jax.numpy as jnp
from jax.experimental import pallas as pl
from jax.experimental.pallas import tpu as pltpu

BN_EPS = 1e-5
_VMEM_BUDGET = 16 * 1024 * 1024   # budget for double-buffered streamed blocks
_VMEM_LIMIT = 48 * 1024 * 1024    # scoped VMEM limit (safe on v5e/v6e/v7x)
_MAX_NB = 8                       # cap on per-step batch blocking (static unroll)


def _round_up(x, m):
    return (x + m - 1) // m * m


def _stats_kernel(x_ref, w_ref, sum_ref, ssq_ref, *, nb):
    """Phase 1: per-channel moments of the *bias-free* conv y = W @ x.

    Bias-free => zero-padded spatial columns contribute exactly 0, so no mask
    is needed, and the bias is removed from the mean before squaring (helps the
    E[y^2]-E[y]^2 cancellation).

    x_ref:   (nb, Cin, tm)   streamed input tile
    w_ref:   (Cout, Cin)     conv weight (resident)
    sum_ref: (Cout, 1)       per-batch-block partial, resident across spatial tiles
    ssq_ref: (Cout, 1)
    """
    @pl.when(pl.program_id(1) == 0)
    def _():
        sum_ref[...] = jnp.zeros_like(sum_ref)
        ssq_ref[...] = jnp.zeros_like(ssq_ref)

    w = w_ref[...]
    s = jnp.zeros_like(sum_ref)
    q = jnp.zeros_like(ssq_ref)
    for i in range(nb):  # static unroll, nb <= 8
        y = jnp.dot(w, x_ref[i], preferred_element_type=jnp.float32)
        s = s + jnp.sum(y, axis=1, keepdims=True)
        q = q + jnp.sum(y * y, axis=1, keepdims=True)
    sum_ref[...] += s
    ssq_ref[...] += q


def _fused_conv_bn_kernel(x_ref, w_ref, b_ref, o_ref, *, nb):
    """Phase 2: out = (scale*W) @ x + (beta - scale*mean_c).

    x_ref: (nb, Cin, tm);  w_ref: (Cout, Cin) fused weight;  b_ref: (Cout, 1)
    o_ref: (nb, Cout, tm)  lane-dense (tm multiple of 128) unmasked stores.
    """
    w = w_ref[...]
    b = b_ref[...]
    for i in range(nb):
        o_ref[i] = jnp.dot(w, x_ref[i], preferred_element_type=jnp.float32) + b


def branch0_forward(x_nchw, conv_w, conv_b, bn_gamma, bn_beta, *, tile_m=2048):
    """x_nchw: (N, Cin, H, W); conv_w: (Cout, Cin); conv_b/bn_gamma/bn_beta: (Cout,)."""
    N, Cin, H, W = x_nchw.shape
    Cout = conv_w.shape[0]
    HW = H * W

    # ---- tiling ---------------------------------------------------------
    hw128 = _round_up(HW, 128)
    bytes_per_lane = 4 * (Cin + Cout)  # streamed in + out bytes per lane (f32)
    tm_cap = max(128, (_VMEM_BUDGET // (2 * bytes_per_lane)) // 128 * 128)
    tm = min(_round_up(tile_m, 128), hw128, tm_cap)
    num_t = -(-hw128 // tm)
    tm = _round_up(-(-hw128 // num_t), 128)      # rebalance to minimize padding
    hw_pad = num_t * tm

    nb = 1
    for d in range(min(N, _MAX_NB), 0, -1):      # block batch samples per step
        if N % d == 0 and 2 * d * bytes_per_lane * tm <= _VMEM_BUDGET:
            nb = d
            break
    num_n = N // nb

    # Free reshape (no HBM transpose); zero-pad the spatial axis only if needed.
    x3d = x_nchw.reshape(N, Cin, HW).astype(jnp.float32)
    if hw_pad != HW:
        # TODO(synk): handle the ragged last tile in-kernel (masked store) to
        # avoid this extra HBM pass when H*W is not a multiple of 128.
        x3d = jnp.pad(x3d, ((0, 0), (0, 0), (0, hw_pad - HW)))

    w = conv_w.astype(jnp.float32)               # (Cout, Cin)

    # ---- phase 1: per-channel batch statistics (no conv output stored) ---
    stats_kernel = functools.partial(_stats_kernel, nb=nb)
    part_sum, part_ssq = pl.pallas_call(
        stats_kernel,
        out_shape=(
            jax.ShapeDtypeStruct((num_n, Cout, 1), jnp.float32),
            jax.ShapeDtypeStruct((num_n, Cout, 1), jnp.float32),
        ),
        grid=(num_n, num_t),
        in_specs=[
            pl.BlockSpec((nb, Cin, tm), lambda n, t: (n, 0, t)),
            pl.BlockSpec((Cout, Cin), lambda n, t: (0, 0)),
        ],
        out_specs=(
            pl.BlockSpec((None, Cout, 1), lambda n, t: (n, 0, 0)),
            pl.BlockSpec((None, Cout, 1), lambda n, t: (n, 0, 0)),
        ),
        compiler_params=pltpu.CompilerParams(
            dimension_semantics=("parallel", "arbitrary"),
            vmem_limit_bytes=_VMEM_LIMIT,
        ),
    )(x3d, w)

    # ---- tiny per-channel epilogue (Cout values) in plain JAX ------------
    m_total = jnp.float32(N * HW)
    sum_c = jnp.sum(part_sum, axis=0)            # (Cout, 1), bias-free moments
    ssq_c = jnp.sum(part_ssq, axis=0)
    mean_c = sum_c / m_total
    var = jnp.maximum(ssq_c / m_total - mean_c * mean_c, 0.0)
    inv_std = jax.lax.rsqrt(var + BN_EPS)
    scale = bn_gamma.reshape(Cout, 1).astype(jnp.float32) * inv_std
    w_fused = scale * w                          # (Cout, Cin)
    # out = scale*(W@x + b - (mean_c + b)) + beta  => conv bias cancels:
    b_fused = bn_beta.reshape(Cout, 1).astype(jnp.float32) - scale * mean_c

    # ---- phase 2: fused conv + BN affine, written straight to the output -
    fused_kernel = functools.partial(_fused_conv_bn_kernel, nb=nb)
    out = pl.pallas_call(
        fused_kernel,
        out_shape=jax.ShapeDtypeStruct((N, Cout, hw_pad), jnp.float32),
        grid=(num_n, num_t),
        in_specs=[
            pl.BlockSpec((nb, Cin, tm), lambda n, t: (n, 0, t)),
            pl.BlockSpec((Cout, Cin), lambda n, t: (0, 0)),
            pl.BlockSpec((Cout, 1), lambda n, t: (0, 0)),
        ],
        out_specs=pl.BlockSpec((nb, Cout, tm), lambda n, t: (n, 0, t)),
        compiler_params=pltpu.CompilerParams(
            dimension_semantics=("parallel", "parallel"),
            vmem_limit_bytes=_VMEM_LIMIT,
        ),
    )(x3d, w_fused, b_fused)

    if hw_pad != HW:
        out = out[:, :, :HW]
    return out.reshape(N, Cout, H, W)


def init_params(key, in_ch, out_ch):
    # Deterministic init mimicking PyTorch defaults (kernel 1x1).
    kw, kb = jax.random.split(key)
    bound = 1.0 / jnp.sqrt(jnp.float32(in_ch))
    conv_w = jax.random.uniform(kw, (out_ch, in_ch), jnp.float32, -bound, bound)
    conv_b = jax.random.uniform(kb, (out_ch,), jnp.float32, -bound, bound)
    bn_gamma = jnp.ones((out_ch,), jnp.float32)
    bn_beta = jnp.zeros((out_ch,), jnp.float32)
    return conv_w, conv_b, bn_gamma, bn_beta


if __name__ == "__main__":
    key = jax.random.PRNGKey(0)
    k_x, k_p = jax.random.split(key)

    N, in_ch, out_ch, S = 2, 4, 8, 16
    x = jax.random.normal(k_x, (N, in_ch, S, S), dtype=jnp.float32)
    conv_w, conv_b, bn_gamma, bn_beta = init_params(k_p, in_ch, out_ch)

    out = branch0_forward(x, conv_w, conv_b, bn_gamma, bn_beta)
    out = jax.block_until_ready(out)

    # Pure-JAX reference of the same math (1x1 conv + training-mode BatchNorm).
    y_ref = jnp.einsum("nchw,oc->nohw", x, conv_w) + conv_b[None, :, None, None]
    mean = jnp.mean(y_ref, axis=(0, 2, 3), keepdims=True)
    var = jnp.mean((y_ref - mean) ** 2, axis=(0, 2, 3), keepdims=True)
    ref = (y_ref - mean) * jax.lax.rsqrt(var + BN_EPS) \
        * bn_gamma[None, :, None, None] + bn_beta[None, :, None, None]

    assert out.shape == (N, out_ch, S, S)
    assert jnp.max(jnp.abs(out - ref)) < 2e-4

    print("KERNEL_OK")
</pallas_src>

<mosaic_0001>
module attributes {stable_mosaic.version = 11 : i64} {
  func.func @_stats_kernel(%arg0: i32, %arg1: i32, %arg2: memref<2x4x256xf32, #tpu.memory_space<vmem>>, %arg3: memref<8x4xf32, #tpu.memory_space<vmem>>, %arg4: memref<1x8x1xf32, #tpu.memory_space<vmem>>, %arg5: memref<1x8x1xf32, #tpu.memory_space<vmem>>) attributes {dimension_semantics = [#tpu.dimension_semantics<parallel>, #tpu.dimension_semantics<arbitrary>], iteration_bounds = array<i64: 1, 1>, scalar_prefetch = 0 : i64, scratch_operands = 0 : i64, tpu.core_type = #tpu.core_type<tc>, window_params = [{transform_indices = @transform_0, window_bounds = array<i64: 2, 4, 256>}, {pipeline_mode = #tpu.pipeline_mode<synchronous>, transform_indices = @transform_1, window_bounds = array<i64: 8, 4>}, {transform_indices = @transform_2, window_bounds = array<i64: 1, 8, 1>}, {transform_indices = @transform_3, window_bounds = array<i64: 1, 8, 1>}]} {
    %c0_i32 = arith.constant 0 : i32
    %0 = arith.cmpi eq, %arg1, %c0_i32 : i32
    %1 = arith.extui %0 : i1 to i32
    %c0_i32_0 = arith.constant 0 : i32
    %2 = arith.cmpi ne, %1, %c0_i32_0 : i32
    scf.if %2 {
      %cst_26 = arith.constant 0.000000e+00 : f32
      %38 = vector.broadcast %cst_26 : f32 to vector<8x1xf32>
      %c0_27 = arith.constant 0 : index
      %c0_28 = arith.constant 0 : index
      %c0_29 = arith.constant 0 : index
      %39 = vector.load %arg4[%c0_27, %c0_28, %c0_29] : memref<1x8x1xf32, #tpu.memory_space<vmem>>, vector<1x8x1xf32>
      %40 = vector.shape_cast %39 : vector<1x8x1xf32> to vector<8x1xf32>
      %41 = vector.shape_cast %38 : vector<8x1xf32> to vector<1x8x1xf32>
      tpu.vector_store %arg4[%c0_27, %c0_28, %c0_29], %41 {strides = array<i32>} : memref<1x8x1xf32, #tpu.memory_space<vmem>>, vector<1x8x1xf32>,
      %cst_30 = arith.constant 0.000000e+00 : f32
      %42 = vector.broadcast %cst_30 : f32 to vector<8x1xf32>
      %c0_31 = arith.constant 0 : index
      %c0_32 = arith.constant 0 : index
      %c0_33 = arith.constant 0 : index
      %43 = vector.load %arg5[%c0_31, %c0_32, %c0_33] : memref<1x8x1xf32, #tpu.memory_space<vmem>>, vector<1x8x1xf32>
      %44 = vector.shape_cast %43 : vector<1x8x1xf32> to vector<8x1xf32>
      %45 = vector.shape_cast %42 : vector<8x1xf32> to vector<1x8x1xf32>
      tpu.vector_store %arg5[%c0_31, %c0_32, %c0_33], %45 {strides = array<i32>} : memref<1x8x1xf32, #tpu.memory_space<vmem>>, vector<1x8x1xf32>,
    } else {
    }
    %c0 = arith.constant 0 : index
    %c0_1 = arith.constant 0 : index
    %3 = vector.load %arg3[%c0, %c0_1] : memref<8x4xf32, #tpu.memory_space<vmem>>, vector<8x4xf32>
    %cst = arith.constant 0.000000e+00 : f32
    %4 = vector.broadcast %cst : f32 to vector<8x1xf32>
    %cst_2 = arith.constant 0.000000e+00 : f32
    %5 = vector.broadcast %cst_2 : f32 to vector<8x1xf32>
    %c0_3 = arith.constant 0 : index
    %c0_4 = arith.constant 0 : index
    %c0_5 = arith.constant 0 : index
    %6 = vector.load %arg2[%c0_3, %c0_4, %c0_5] : memref<2x4x256xf32, #tpu.memory_space<vmem>>, vector<1x4x256xf32>
    %7 = vector.shape_cast %6 : vector<1x4x256xf32> to vector<4x256xf32>
    %cst_6 = arith.constant dense<0.000000e+00> : vector<8x256xf32>
    %8 = tpu.matmul %3, %7, %cst_6 {dimension_numbers = #tpu.dot_dimension_numbers<[1], [0], [0], [1], [0, 0, 1, 1], [], []>} : vector<8x4xf32>, vector<4x256xf32>, vector<8x256xf32> -> vector<8x256xf32>
    %cst_7 = arith.constant dense<0.000000e+00> : vector<8xf32>
    %9 = vector.multi_reduction <add>, %8, %cst_7 [1] : vector<8x256xf32> to vector<8xf32>
    %10 = vector.shape_cast %9 : vector<8xf32> to vector<8x1xf32>
    %11 = arith.addf %4, %10 : vector<8x1xf32>
    %12 = arith.mulf %8, %8 : vector<8x256xf32>
    %cst_8 = arith.constant dense<0.000000e+00> : vector<8xf32>
    %13 = vector.multi_reduction <add>, %12, %cst_8 [1] : vector<8x256xf32> to vector<8xf32>
    %14 = vector.shape_cast %13 : vector<8xf32> to vector<8x1xf32>
    %15 = arith.addf %5, %14 : vector<8x1xf32>
    %c1 = arith.constant 1 : index
    %c0_9 = arith.constant 0 : index
    %c0_10 = arith.constant 0 : index
    %16 = vector.load %arg2[%c1, %c0_9, %c0_10] : memref<2x4x256xf32, #tpu.memory_space<vmem>>, vector<1x4x256xf32>
    %17 = vector.shape_cast %16 : vector<1x4x256xf32> to vector<4x256xf32>
    %cst_11 = arith.constant dense<0.000000e+00> : vector<8x256xf32>
    %18 = tpu.matmul %3, %17, %cst_11 {dimension_numbers = #tpu.dot_dimension_numbers<[1], [0], [0], [1], [0, 0, 1, 1], [], []>} : vector<8x4xf32>, vector<4x256xf32>, vector<8x256xf32> -> vector<8x256xf32>
    %cst_12 = arith.constant dense<0.000000e+00> : vector<8xf32>
    %19 = vector.multi_reduction <add>, %18, %cst_12 [1] : vector<8x256xf32> to vector<8xf32>
    %20 = vector.shape_cast %19 : vector<8xf32> to vector<8x1xf32>
    %21 = arith.addf %11, %20 : vector<8x1xf32>
    %22 = arith.mulf %18, %18 : vector<8x256xf32>
    %cst_13 = arith.constant dense<0.000000e+00> : vector<8xf32>
    %23 = vector.multi_reduction <add>, %22, %cst_13 [1] : vector<8x256xf32> to vector<8xf32>
    %24 = vector.shape_cast %23 : vector<8xf32> to vector<8x1xf32>
    %25 = arith.addf %15, %24 : vector<8x1xf32>
    %c0_14 = arith.constant 0 : index
    %c0_15 = arith.constant 0 : index
    %c0_16 = arith.constant 0 : index
    %26 = vector.load %arg4[%c0_14, %c0_15, %c0_16] : memref<1x8x1xf32, #tpu.memory_space<vmem>>, vector<1x8x1xf32>
    %27 = vector.shape_cast %26 : vector<1x8x1xf32> to vector<8x1xf32>
    %28 = arith.addf %27, %21 : vector<8x1xf32>
    %c0_17 = arith.constant 0 : index
    %c0_18 = arith.constant 0 : index
    %c0_19 = arith.constant 0 : index
    %29 = vector.load %arg4[%c0_17, %c0_18, %c0_19] : memref<1x8x1xf32, #tpu.memory_space<vmem>>, vector<1x8x1xf32>
    %30 = vector.shape_cast %29 : vector<1x8x1xf32> to vector<8x1xf32>
    %31 = vector.shape_cast %28 : vector<8x1xf32> to vector<1x8x1xf32>
    tpu.vector_store %arg4[%c0_17, %c0_18, %c0_19], %31 {strides = array<i32>} : memref<1x8x1xf32, #tpu.memory_space<vmem>>, vector<1x8x1xf32>,
    %c0_20 = arith.constant 0 : index
    %c0_21 = arith.constant 0 : index
    %c0_22 = arith.constant 0 : index
    %32 = vector.load %arg5[%c0_20, %c0_21, %c0_22] : memref<1x8x1xf32, #tpu.memory_space<vmem>>, vector<1x8x1xf32>
    %33 = vector.shape_cast %32 : vector<1x8x1xf32> to vector<8x1xf32>
    %34 = arith.addf %33, %25 : vector<8x1xf32>
    %c0_23 = arith.constant 0 : index
    %c0_24 = arith.constant 0 : index
    %c0_25 = arith.constant 0 : index
    %35 = vector.load %arg5[%c0_23, %c0_24, %c0_25] : memref<1x8x1xf32, #tpu.memory_space<vmem>>, vector<1x8x1xf32>
    %36 = vector.shape_cast %35 : vector<1x8x1xf32> to vector<8x1xf32>
    %37 = vector.shape_cast %34 : vector<8x1xf32> to vector<1x8x1xf32>
    tpu.vector_store %arg5[%c0_23, %c0_24, %c0_25], %37 {strides = array<i32>} : memref<1x8x1xf32, #tpu.memory_space<vmem>>, vector<1x8x1xf32>,
    return
  }
  func.func @transform_0(%arg0: i32, %arg1: i32) -> (i32, i32, i32) {
    %c0_i32 = arith.constant 0 : i32
    %c0_i32_0 = arith.constant 0 : i32
    return %arg0, %c0_i32, %arg1 : i32, i32, i32
  }
  func.func @transform_1(%arg0: i32, %arg1: i32) -> (i32, i32) {
    %c0_i32 = arith.constant 0 : i32
    %c0_i32_0 = arith.constant 0 : i32
    %c0_i32_1 = arith.constant 0 : i32
    return %c0_i32, %c0_i32_0 : i32, i32
  }
  func.func @transform_2(%arg0: i32, %arg1: i32) -> (i32, i32, i32) {
    %c0_i32 = arith.constant 0 : i32
    %c0_i32_0 = arith.constant 0 : i32
    %c0_i32_1 = arith.constant 0 : i32
    return %arg0, %c0_i32, %c0_i32_0 : i32, i32, i32
  }
  func.func @transform_3(%arg0: i32, %arg1: i32) -> (i32, i32, i32) {
    %c0_i32 = arith.constant 0 : i32
    %c0_i32_0 = arith.constant 0 : i32
    %c0_i32_1 = arith.constant 0 : i32
    return %arg0, %c0_i32, %c0_i32_0 : i32, i32, i32
  }
}

</mosaic_0001>

<llo_original>
// kernel: tpu_custom_call.1
$region0: #{tpu_custom_call.1}
  #allocation0 [shape = 'u32[]', space=smem, size = 0x4, offset = 0x4, fixed_abs, tag = 'smem constant byte address 0x4 - core index']
  #allocation1 [shape = 'u32[72,128]{1,0:T(1,128)}', space=vmem, size = 0x9000, scoped, tag = 'internal scratch']
  %s0 = inlined_call_operand.hbm [shape: f32[2,4,256], index: 0, kind: input, shape index: {}]
  %s1 = inlined_call_operand.vmem [shape: f32[8,4], index: 1, kind: input, shape index: {}]
  %s2 = inlined_call_operand.vmem [shape: f32[1,8,1], index: 2, kind: output, shape index: {0}]
  %s3 = inlined_call_operand.vmem [shape: f32[1,8,1], index: 3, kind: output, shape index: {1}]
  %4 = xla_tuple %s2, %s3
  %s5 = sld [smem:[#allocation0]]
  $region34: #{tpu_custom_call.1} parent=0
    _
  %s7 = ssub.s32 1, %s5
  %s8 = scalar_select 0, %s7, %s5
  $region1: #{tpu_custom_call.1} parent=0
    #allocation2 [shape = 'u8[8192]{0}', space=vmem, size = 0x2000, scoped, tag = 'input window, operand 0, single buffered']
    #allocation3 [shape = 's32[1]{0}', space=sflag, size = 0x4, scoped, tag = 'scoped memory for tpu_custom_call.1']
    %9 = vsyncpa [#allocation3], 0
    // Predicated region
    $region2: #{tpu_custom_call.1} parent=1 // pred_check
      _
    $region3: #{tpu_custom_call.1} parent=1 // pred_check_branch
      %11 = sbr.rel (0) target = $region5
    $region4: #{tpu_custom_call.1} parent=1 // pred_region
      %13 = vsyncadd [#allocation3], 0
      %s14 = sshll.u32 %s0, 4
      %s15 = int_to_ptr.hbm [resolvable:$true] %s14
      %s16 = sshll.u32 [#allocation2], 4
      %s17 = int_to_ptr.vmem [resolvable:$true] %s16
      %22 = dma.hbm_to_vmem [thread:$0]  %s15, 256, %s17, [#allocation3], 128, 128, 8
    $region5: #{tpu_custom_call.1} parent=1 // pred_fallthru
      _
    // Predicated region
    $region6: #{tpu_custom_call.1} parent=1 // pred_check
      _
    $region7: #{tpu_custom_call.1} parent=1 // pred_check_branch
      %24 = sbr.rel (0) target = $region9
    $region8: #{tpu_custom_call.1} parent=1 // pred_region
      _
    $region9: #{tpu_custom_call.1} parent=1 // pred_fallthru
      _
    // Predicated region
    $region10: #{tpu_custom_call.1} parent=1 // pred_check
      _
    $region11: #{tpu_custom_call.1} parent=1 // pred_check_branch
      %26 = sbr.rel (0) target = $region13
    $region12: #{tpu_custom_call.1} parent=1 // pred_region
      %28 = dma.done [#allocation3], 256
    $region13: #{tpu_custom_call.1} parent=1 // pred_fallthru
      _
    %p29 = scmp.eq.s32.totalorder 0, 0
    // Predicated region
    $region14: #{tpu_custom_call.1} parent=1 // pred_check
      %p30 = pneg %p29
    $region15: #{tpu_custom_call.1} parent=1 // pred_check_branch
      %32 = sbr.rel (%p30) target = $region17
    $region16: #{tpu_custom_call.1} parent=1 // pred_region
      %vm33 = vcmask 7168
      %34 = vst.msk [vmem:[%s2] sm:$0xff] %vm33, 0.0
      %35 = vst.msk [vmem:[%s3] sm:$0xff] %vm33, 0.0
    $region17: #{tpu_custom_call.1} parent=1 // pred_fallthru
      _
    %v36 = vld [vmem:[%s1] sm:$0xff]
    %v37 = vld [vmem:[#allocation2] sm:$0xff]
    %39 = vst [vmem:[#allocation1] ss:$2 sm:$0xff] %v37
    %v40 = vld.sshfl [vmem:[#allocation1] sm:$0xff pattern:$0x75316420]
    %v41 = vld.sshfl [vmem:[#allocation1 + $0x8] sm:$0xff pattern:$0x75316420]
    %vm42 = vcmask 31744
    %v44 = vsel %vm42, %v36, 0
    %vm46 = vcmask 1043456
    %v47 = vsel %vm46, %v40, 0
    %v49 = vsel %vm46, %v41, 0
    %51 = vmatpush.msra.mxu0 0.0
    %52 = vmatpush.msra.mxu0 0.0
    %53 = vmatpush.msra.mxu0 0.0
    %54 = vmatpush.msra.mxu0 0.0
    %55 = vmatpush.msra.mxu0 0.0
    %56 = vmatpush.msra.mxu0 0.0
    %57 = vmatpush.msra.mxu0 0.0
    %58 = vmatpush.msra.mxu0 0.0
    %59 = vmatpush.msra.mxu0 0.0
    %60 = vmatpush.msra.mxu0 0.0
    %61 = vmatpush.msra.mxu0 0.0
    %62 = vmatpush.msra.mxu0 0.0
    %63 = vmatpush.msra.mxu0 0.0
    %64 = vmatpush.msra.mxu0 0.0
    %65 = vmatpush.msra.mxu0 0.0
    %66 = vmatpush.msra.mxu0 %v47
    %67 = vmatmul.f32.gmra.mxu0 %v44
    %v68 = vpop.f32.mrf.mxu0
    %v69 = vadd.f32 0.0, %v68
    %70 = vdwg.mxu0
    %71 = vmatpush.msra.mxu0 0.0
    %72 = vmatpush.msra.mxu0 0.0
    %73 = vmatpush.msra.mxu0 0.0
    %74 = vmatpush.msra.mxu0 0.0
    %75 = vmatpush.msra.mxu0 0.0
    %76 = vmatpush.msra.mxu0 0.0
    %77 = vmatpush.msra.mxu0 0.0
    %78 = vmatpush.msra.mxu0 0.0
    %79 = vmatpush.msra.mxu0 0.0
    %80 = vmatpush.msra.mxu0 0.0
    %81 = vmatpush.msra.mxu0 0.0
    %82 = vmatpush.msra.mxu0 0.0
    %83 = vmatpush.msra.mxu0 0.0
    %84 = vmatpush.msra.mxu0 0.0
    %85 = vmatpush.msra.mxu0 0.0
    %86 = vmatpush.msra.mxu0 %v49
    %87 = vmatmul.f32.gmra.mxu0 %v44
    %v88 = vpop.f32.mrf.mxu0
    %v89 = vadd.f32 0.0, %v88
    %90 = vdwg.mxu0
    %v91 = vadd.f32 %v69, %v89
    %92 = vadd.xlane.f32.xlu0 %v91
    %v93 = vpop.xlane.xlu0 %92
    %v94 = vadd.f32 %v93, 0.0
    %v95 = vmul.f32 %v69, %v69
    %v96 = vmul.f32 %v89, %v89
    %v97 = vadd.f32 %v95, %v96
    %98 = vadd.xlane.f32.xlu0 %v97
    %v99 = vpop.xlane.xlu0 %98
    %v100 = vadd.f32 %v99, 0.0
    %s101 = scalar_lea.vmem [#allocation2], 8
    %v102 = vld [vmem:[%s101] sm:$0xff]
    %104 = vst [vmem:[#allocation1] ss:$2 sm:$0xff] %v102
    %v105 = vld.sshfl [vmem:[#allocation1] sm:$0xff pattern:$0x75316420]
    %v106 = vld.sshfl [vmem:[#allocation1 + $0x8] sm:$0xff pattern:$0x75316420]
    %v107 = vsel %vm46, %v105, 0
    %v109 = vsel %vm46, %v106, 0
    %111 = vmatpush.msra.mxu0 0.0
    %112 = vmatpush.msra.mxu0 0.0
    %113 = vmatpush.msra.mxu0 0.0
    %114 = vmatpush.msra.mxu0 0.0
    %115 = vmatpush.msra.mxu0 0.0
    %116 = vmatpush.msra.mxu0 0.0
    %117 = vmatpush.msra.mxu0 0.0
    %118 = vmatpush.msra.mxu0 0.0
    %119 = vmatpush.msra.mxu0 0.0
    %120 = vmatpush.msra.mxu0 0.0
    %121 = vmatpush.msra.mxu0 0.0
    %122 = vmatpush.msra.mxu0 0.0
    %123 = vmatpush.msra.mxu0 0.0
    %124 = vmatpush.msra.mxu0 0.0
    %125 = vmatpush.msra.mxu0 0.0
    %126 = vmatpush.msra.mxu0 %v107
    %127 = vmatmul.f32.gmra.mxu0 %v44
    %v128 = vpop.f32.mrf.mxu0
    %v129 = vadd.f32 0.0, %v128
    %130 = vdwg.mxu0
    %131 = vmatpush.msra.mxu0 0.0
    %132 = vmatpush.msra.mxu0 0.0
    %133 = vmatpush.msra.mxu0 0.0
    %134 = vmatpush.msra.mxu0 0.0
    %135 = vmatpush.msra.mxu0 0.0
    %136 = vmatpush.msra.mxu0 0.0
    %137 = vmatpush.msra.mxu0 0.0
    %138 = vmatpush.msra.mxu0 0.0
    %139 = vmatpush.msra.mxu0 0.0
    %140 = vmatpush.msra.mxu0 0.0
    %141 = vmatpush.msra.mxu0 0.0
    %142 = vmatpush.msra.mxu0 0.0
    %143 = vmatpush.msra.mxu0 0.0
    %144 = vmatpush.msra.mxu0 0.0
    %145 = vmatpush.msra.mxu0 0.0
    %146 = vmatpush.msra.mxu0 %v109
    %147 = vmatmul.f32.gmra.mxu0 %v44
    %v148 = vpop.f32.mrf.mxu0
    %v149 = vadd.f32 0.0, %v148
    %150 = vdwg.mxu0
    %v151 = vadd.f32 %v129, %v149
    %152 = vadd.xlane.f32.xlu0 %v151
    %v153 = vpop.xlane.xlu0 %152
    %v154 = vadd.f32 %v94, %v153
    %v155 = vmul.f32 %v129, %v129
    %v156 = vmul.f32 %v149, %v149
    %v157 = vadd.f32 %v155, %v156
    %158 = vadd.xlane.f32.xlu0 %v157
    %v159 = vpop.xlane.xlu0 %158
    %v160 = vadd.f32 %v100, %v159
    %v161 = vld [vmem:[%s2] sm:$0xff]
    %v162 = vadd.f32 %v161, %v154
    %vm163 = vcmask 7168
    %164 = vst.msk [vmem:[%s2] sm:$0xff] %vm163, %v162
    %v165 = vld [vmem:[%s3] sm:$0xff]
    %v166 = vadd.f32 %v165, %v160
    %167 = vst.msk [vmem:[%s3] sm:$0xff] %vm163, %v166
    // Predicated region
    $region18: #{tpu_custom_call.1} parent=1 // pred_check
      _
    $region19: #{tpu_custom_call.1} parent=1 // pred_check_branch
      %169 = sbr.rel (0) target = $region21
    $region20: #{tpu_custom_call.1} parent=1 // pred_region
      _
    $region21: #{tpu_custom_call.1} parent=1 // pred_fallthru
      _
    // Predicated region
    $region22: #{tpu_custom_call.1} parent=1 // pred_check
      _
    $region23: #{tpu_custom_call.1} parent=1 // pred_check_branch
      %171 = sbr.rel (0) target = $region25
    $region24: #{tpu_custom_call.1} parent=1 // pred_region
      _
    $region25: #{tpu_custom_call.1} parent=1 // pred_fallthru
      _
    // Predicated region
    $region26: #{tpu_custom_call.1} parent=1 // pred_check
      _
    $region27: #{tpu_custom_call.1} parent=1 // pred_check_branch
      %173 = sbr.rel (0) target = $region29
    $region28: #{tpu_custom_call.1} parent=1 // pred_region
      _
    $region29: #{tpu_custom_call.1} parent=1 // pred_fallthru
      _
    // Predicated region
    $region30: #{tpu_custom_call.1} parent=1 // pred_check
      _
    $region31: #{tpu_custom_call.1} parent=1 // pred_check_branch
      %175 = sbr.rel (0) target = $region33
    $region32: #{tpu_custom_call.1} parent=1 // pred_region
      _
    $region33: #{tpu_custom_call.1} parent=1 // pred_fallthru
      _
    %176 = vsyncpa [#allocation3], 1

</llo_original>
